<compile_context>
chip_gen: v7x
topology: tpu7x:2x2x1
jax: 0.10.0
libtpu: 0.0.40
codegen_flags: <defaults>
</compile_context>

<pallas_src>
import functools

import jax
import jax.numpy as jnp
from jax import lax
from jax.experimental import pallas as pl
from jax.experimental.pallas import tpu as pltpu


# ----------------------------- Pallas kernel ------------------------------ #
def _encoder_block_kernel(p_ref, w_ref, b_ref, o_ref, *, use_instance_norm, use_relu, eps):
    # p_ref: (Kdim, P)   one sample's im2col patches (Kdim on sublanes, P on lanes)
    # w_ref: (Cout, Kdim) reshaped conv weight (resident: constant index_map)
    # b_ref: (Cout, 1)    conv bias
    # o_ref: (Cout, P)    lane-dense output along P
    acc = jnp.dot(w_ref[...], p_ref[...], preferred_element_type=jnp.float32)
    acc = acc + b_ref[...]

    if use_instance_norm:
        # InstanceNorm2d: normalize per (sample, channel) over spatial dims (P),
        # biased variance, eps=1e-5, affine=False.
        mean = jnp.mean(acc, axis=-1, keepdims=True)
        centered = acc - mean
        var = jnp.mean(centered * centered, axis=-1, keepdims=True)
        acc = centered * lax.rsqrt(var + eps)

    if use_relu:
        acc = jnp.maximum(acc, 0.0)

    o_ref[...] = acc.astype(o_ref.dtype)


def encoder_block_pallas(x, weight, bias, *, kernel_size, stride, padding_size,
                         use_reflect_pad, use_instance_norm, use_relu):
    """x: (N, Cin, H, W) NCHW.  weight: (Cout, Cin, K, K).  bias: (Cout,)."""
    N, Cin, H, W = x.shape
    Cout = weight.shape[0]
    K = kernel_size

    # ----- glue: padding + im2col (plain JAX), kept in kernel-native layout -----
    pad_mode = "reflect" if use_reflect_pad else "constant"
    xp = jnp.pad(x, ((0, 0), (0, 0),
                     (padding_size, padding_size),
                     (padding_size, padding_size)), mode=pad_mode)
    Hp, Wp = xp.shape[2], xp.shape[3]
    Ho = (Hp - K) // stride + 1
    Wo = (Wp - K) // stride + 1

    # Flattened contraction dim ordered as (Cin, kh, kw) to match
    # weight.reshape(Cout, Cin*K*K).  No transpose: layout is already (N, Kdim, P).
    slabs = []
    for kh in range(K):
        for kw in range(K):
            slabs.append(xp[:, :, kh:kh + stride * Ho:stride, kw:kw + stride * Wo:stride])
    patches = jnp.stack(slabs, axis=2)                 # (N, Cin, K*K, Ho, Wo)
    patches = patches.reshape(N, Cin * K * K, Ho * Wo)  # (N, Kdim, P)

    P = Ho * Wo
    Kdim = Cin * K * K
    w2d = weight.reshape(Cout, Kdim)                    # (Cout, Kdim) -- no transpose
    b2d = bias.reshape(Cout, 1)

    kernel = functools.partial(
        _encoder_block_kernel,
        use_instance_norm=use_instance_norm,
        use_relu=use_relu,
        eps=1e-5,
    )

    out_flat = pl.pallas_call(
        kernel,
        out_shape=jax.ShapeDtypeStruct((N, Cout, P), jnp.float32),
        grid_spec=pltpu.PrefetchScalarGridSpec(
            num_scalar_prefetch=0,
            grid=(N,),
            in_specs=[
                pl.BlockSpec((None, Kdim, P), lambda i: (i, 0, 0)),
                pl.BlockSpec((Cout, Kdim), lambda i: (0, 0)),   # resident across grid
                pl.BlockSpec((Cout, 1), lambda i: (0, 0)),      # resident across grid
            ],
            out_specs=pl.BlockSpec((None, Cout, P), lambda i: (i, 0, 0)),
        ),
        compiler_params=pltpu.CompilerParams(dimension_semantics=("parallel",)),
    )(patches, w2d, b2d)

    # (N, Cout, P) -> NCHW directly, no transpose.
    return out_flat.reshape(N, Cout, Ho, Wo)


# ------------------------------ reference --------------------------------- #
def encoder_block_ref(x, weight, bias, *, kernel_size, stride, padding_size,
                      use_reflect_pad, use_instance_norm, use_relu):
    if use_reflect_pad:
        xp = jnp.pad(x, ((0, 0), (0, 0),
                         (padding_size, padding_size),
                         (padding_size, padding_size)), mode="reflect")
        conv_pad = "VALID"
    else:
        xp = x
        conv_pad = [(padding_size, padding_size)] * 2
    out = lax.conv_general_dilated(
        xp, weight, window_strides=(stride, stride), padding=conv_pad,
        dimension_numbers=("NCHW", "OIHW", "NCHW"))
    out = out + bias.reshape(1, -1, 1, 1)
    if use_instance_norm:
        mean = jnp.mean(out, axis=(2, 3), keepdims=True)
        var = jnp.mean((out - mean) ** 2, axis=(2, 3), keepdims=True)
        out = (out - mean) * lax.rsqrt(var + 1e-5)
    if use_relu:
        out = jnp.maximum(out, 0.0)
    return out


# -------------------------------- main ------------------------------------ #
if __name__ == "__main__":
    # EncoderBlock config (transpose_conv=False branch).
    # TODO(synk): ConvTranspose2d (transpose_conv=True) branch not implemented here.
    filter_count = 8
    input_channel_count = 4
    kernel_size = 3
    stride = 2
    padding_size = 1
    use_reflect_pad = True
    use_instance_norm = True
    use_relu = True

    key = jax.random.PRNGKey(0)
    kx, kw, kb = jax.random.split(key, 3)

    x = jax.random.normal(kx, (2, input_channel_count, 16, 16), dtype=jnp.float32)
    # Conv weight ~ N(0, 0.02) per Block.init_conv_weights(init_type='normal').
    weight = 0.02 * jax.random.normal(
        kw, (filter_count, input_channel_count, kernel_size, kernel_size), dtype=jnp.float32)
    # Bias: deterministic small values (PyTorch default uniform init; synthetic here).
    bias = 0.01 * jax.random.normal(kb, (filter_count,), dtype=jnp.float32)

    cfg = dict(kernel_size=kernel_size, stride=stride, padding_size=padding_size,
               use_reflect_pad=use_reflect_pad, use_instance_norm=use_instance_norm,
               use_relu=use_relu)

    out = encoder_block_pallas(x, weight, bias, **cfg)
    out = jax.block_until_ready(out)

    ref = jax.block_until_ready(encoder_block_ref(x, weight, bias, **cfg))
    if not jnp.allclose(out, ref, atol=1e-4, rtol=1e-4):
        raise AssertionError("Pallas EncoderBlock output mismatch vs reference")

    print("KERNEL_OK")
</pallas_src>

<mosaic_0001>
module attributes {stable_mosaic.version = 11 : i64} {
  func.func @_encoder_block_kernel(%arg0: i32, %arg1: memref<1x36x64xf32, #tpu.memory_space<vmem>>, %arg2: memref<8x36xf32, #tpu.memory_space<vmem>>, %arg3: memref<8x1xf32, #tpu.memory_space<vmem>>, %arg4: memref<1x8x64xf32, #tpu.memory_space<vmem>>) attributes {dimension_semantics = [#tpu.dimension_semantics<parallel>], iteration_bounds = array<i64: 2>, scalar_prefetch = 0 : i64, scratch_operands = 0 : i64, tpu.core_type = #tpu.core_type<tc>, window_params = [{transform_indices = @transform_0, window_bounds = array<i64: 1, 36, 64>}, {pipeline_mode = #tpu.pipeline_mode<synchronous>, transform_indices = @transform_1, window_bounds = array<i64: 8, 36>}, {pipeline_mode = #tpu.pipeline_mode<synchronous>, transform_indices = @transform_2, window_bounds = array<i64: 8, 1>}, {transform_indices = @transform_3, window_bounds = array<i64: 1, 8, 64>}]} {
    %c0 = arith.constant 0 : index
    %c0_0 = arith.constant 0 : index
    %0 = vector.load %arg2[%c0, %c0_0] : memref<8x36xf32, #tpu.memory_space<vmem>>, vector<8x36xf32>
    %c0_1 = arith.constant 0 : index
    %c0_2 = arith.constant 0 : index
    %c0_3 = arith.constant 0 : index
    %1 = vector.load %arg1[%c0_1, %c0_2, %c0_3] : memref<1x36x64xf32, #tpu.memory_space<vmem>>, vector<1x36x64xf32>
    %2 = vector.shape_cast %1 : vector<1x36x64xf32> to vector<36x64xf32>
    %cst = arith.constant dense<0.000000e+00> : vector<8x64xf32>
    %3 = tpu.matmul %0, %2, %cst {dimension_numbers = #tpu.dot_dimension_numbers<[1], [0], [0], [1], [0, 0, 1, 1], [], []>} : vector<8x36xf32>, vector<36x64xf32>, vector<8x64xf32> -> vector<8x64xf32>
    %c0_4 = arith.constant 0 : index
    %c0_5 = arith.constant 0 : index
    %4 = vector.load %arg3[%c0_4, %c0_5] : memref<8x1xf32, #tpu.memory_space<vmem>>, vector<8x1xf32>
    %5 = vector.broadcast %4 : vector<8x1xf32> to vector<8x64xf32>
    %6 = arith.addf %3, %5 : vector<8x64xf32>
    %cst_6 = arith.constant dense<0.000000e+00> : vector<8xf32>
    %7 = vector.multi_reduction <add>, %6, %cst_6 [1] : vector<8x64xf32> to vector<8xf32>
    %8 = vector.shape_cast %7 : vector<8xf32> to vector<8x1xf32>
    %cst_7 = arith.constant 6.400000e+01 : f32
    %9 = vector.broadcast %cst_7 : f32 to vector<8x1xf32>
    %10 = arith.divf %8, %9 : vector<8x1xf32>
    %11 = vector.broadcast %10 : vector<8x1xf32> to vector<8x64xf32>
    %12 = arith.subf %6, %11 : vector<8x64xf32>
    %13 = arith.mulf %12, %12 : vector<8x64xf32>
    %cst_8 = arith.constant dense<0.000000e+00> : vector<8xf32>
    %14 = vector.multi_reduction <add>, %13, %cst_8 [1] : vector<8x64xf32> to vector<8xf32>
    %15 = vector.shape_cast %14 : vector<8xf32> to vector<8x1xf32>
    %cst_9 = arith.constant 6.400000e+01 : f32
    %16 = vector.broadcast %cst_9 : f32 to vector<8x1xf32>
    %17 = arith.divf %15, %16 : vector<8x1xf32>
    %cst_10 = arith.constant 9.99999974E-6 : f32
    %18 = vector.broadcast %cst_10 : f32 to vector<8x1xf32>
    %19 = arith.addf %17, %18 : vector<8x1xf32>
    %20 = math.rsqrt %19 : vector<8x1xf32>
    %21 = vector.broadcast %20 : vector<8x1xf32> to vector<8x64xf32>
    %22 = arith.mulf %12, %21 : vector<8x64xf32>
    %cst_11 = arith.constant 0.000000e+00 : f32
    %23 = vector.broadcast %cst_11 : f32 to vector<8x64xf32>
    %24 = arith.maximumf %22, %23 : vector<8x64xf32>
    %c0_12 = arith.constant 0 : index
    %c0_13 = arith.constant 0 : index
    %c0_14 = arith.constant 0 : index
    %25 = vector.load %arg4[%c0_12, %c0_13, %c0_14] : memref<1x8x64xf32, #tpu.memory_space<vmem>>, vector<1x8x64xf32>
    %26 = vector.shape_cast %25 : vector<1x8x64xf32> to vector<8x64xf32>
    %27 = vector.shape_cast %24 : vector<8x64xf32> to vector<1x8x64xf32>
    tpu.vector_store %arg4[%c0_12, %c0_13, %c0_14], %27 {strides = array<i32>} : memref<1x8x64xf32, #tpu.memory_space<vmem>>, vector<1x8x64xf32>,
    return
  }
  func.func @transform_0(%arg0: i32) -> (i32, i32, i32) {
    %c0_i32 = arith.constant 0 : i32
    %c0_i32_0 = arith.constant 0 : i32
    %c0_i32_1 = arith.constant 0 : i32
    return %arg0, %c0_i32, %c0_i32_0 : i32, i32, i32
  }
  func.func @transform_1(%arg0: i32) -> (i32, i32) {
    %c0_i32 = arith.constant 0 : i32
    %c0_i32_0 = arith.constant 0 : i32
    %c0_i32_1 = arith.constant 0 : i32
    return %c0_i32, %c0_i32_0 : i32, i32
  }
  func.func @transform_2(%arg0: i32) -> (i32, i32) {
    %c0_i32 = arith.constant 0 : i32
    %c0_i32_0 = arith.constant 0 : i32
    %c0_i32_1 = arith.constant 0 : i32
    return %c0_i32, %c0_i32_0 : i32, i32
  }
  func.func @transform_3(%arg0: i32) -> (i32, i32, i32) {
    %c0_i32 = arith.constant 0 : i32
    %c0_i32_0 = arith.constant 0 : i32
    %c0_i32_1 = arith.constant 0 : i32
    return %arg0, %c0_i32, %c0_i32_0 : i32, i32, i32
  }
}

</mosaic_0001>

<llo_original>
// kernel: tpu_custom_call.1
$region0: #{tpu_custom_call.1}
  #allocation0 [shape = 'u32[]', space=smem, size = 0x4, offset = 0x4, fixed_abs, tag = 'smem constant byte address 0x4 - core index']
  #allocation1 [shape = 'u32[144,128]{1,0:T(1,128)}', space=vmem, size = 0x12000, scoped, tag = 'internal scratch']
  %s0 = inlined_call_operand.vmem [shape: f32[2,36,64], index: 0, kind: input, shape index: {}]
  %s1 = inlined_call_operand.vmem [shape: f32[8,36], index: 1, kind: input, shape index: {}]
  %s2 = inlined_call_operand.vmem [shape: f32[8,1], index: 2, kind: input, shape index: {}]
  %s3 = inlined_call_operand.hbm [shape: f32[2,8,64], index: 3, kind: output, shape index: {}]
  %s4 = sld [smem:[#allocation0]]
  $region45: #{tpu_custom_call.1} parent=0
    _
  %s6 = ssub.s32 1, %s4
  %s7 = scalar_select 0, %s6, %s4
  $region1: #{tpu_custom_call.1} parent=0
    #allocation2 [shape = 'u8[8192]{0}', space=vmem, size = 0x2000, scoped, tag = 'output window, operand 0']
    #allocation3 [shape = 's32[2]{0}', space=sflag, size = 0x8, scoped, tag = 'scoped memory for tpu_custom_call.1']
    %8 = vsyncpa [#allocation3], 0
    %s9 = scalar_lea.sflag [#allocation3], 1
    %10 = vsyncpa %s9, 0
    loop: start=0, step=1, limit=4
    $region2: #{tpu_custom_call.1} parent=1 // loop_pre_header
      _
    $region3: #{tpu_custom_call.1} parent=1 // loop_header
      %s12 = sphi 0, %s16
      %p13 = scmp.ge.s32.totalorder %s12, 4
      %s22 = sphi 0, %s24
      %s25 = sphi 0, %s22
      %s26 = sphi 0, %s25
      %s42 = sphi 0, %s26
      %s46 = sphi 0, %s46
      %s48 = sphi 0, %s46
      %s49 = sphi 0, %s48
      %s63 = sphi 0, %s49
      %s67 = sphi 0, %s67
      %s69 = sphi 0, %s67
      %s70 = sphi 0, %s69
      %s84 = sphi 0, %s70
      %s90 = sphi 0, %s92
      %s93 = sphi 0, %s90
      %s94 = sphi 0, %s93
      %s110 = sphi 0, %s94
    $region4: #{tpu_custom_call.1} parent=1 // loop_header_branch
      %15 = sbr.rel (%p13) target = $region8
    $region5: #{tpu_custom_call.1} parent=1 // loop_body
      %s17 = ssub.s32 %s12, 1
      %s18 = ssub.s32 %s12, 2
      %s19 = sadd.s32 %s12, 1
      %s20 = ssub.s32 %s12, %s19
      %p21 = scmp.eq.s32.totalorder %s20, 0
      %s23 = sadd.s32 %s22, 1
      %s24 = scalar_select %p21, %s22, %s23
      %p27 = pneg %p21
      %p28 = scmp.eq.s32.totalorder %s12, 1
      %p29 = por %p27, %p28
      %p30 = scmp.ne.s32.totalorder %s22, %s25
      %p31 = scmp.eq.s32.totalorder %s12, 0
      %p32 = por %p30, %p31
      %p33 = scmp.ne.s32.totalorder %s22, %s25
      %p34 = scmp.eq.s32.totalorder %s17, 1
      %p35 = por %p33, %p34
      %p36 = scmp.ne.s32.totalorder %s25, %s26
      %p37 = scmp.eq.s32.totalorder %s17, 0
      %p38 = por %p36, %p37
      %p39 = scmp.ne.s32.totalorder %s25, %s26
      %p40 = scmp.eq.s32.totalorder %s18, 1
      %p41 = por %p39, %p40
      %p43 = scmp.ne.s32.totalorder %s26, %s42
      %p44 = scmp.eq.s32.totalorder %s18, 0
      %p45 = por %p43, %p44
      %s47 = sadd.s32 %s46, 1
      %p50 = scmp.eq.s32.totalorder %s12, 1
      %p51 = scmp.ne.s32.totalorder %s46, %s48
      %p52 = scmp.eq.s32.totalorder %s12, 0
      %p53 = por %p51, %p52
      %p54 = scmp.ne.s32.totalorder %s46, %s48
      %p55 = scmp.eq.s32.totalorder %s17, 1
      %p56 = por %p54, %p55
      %p57 = scmp.ne.s32.totalorder %s48, %s49
      %p58 = scmp.eq.s32.totalorder %s17, 0
      %p59 = por %p57, %p58
      %p60 = scmp.ne.s32.totalorder %s48, %s49
      %p61 = scmp.eq.s32.totalorder %s18, 1
      %p62 = por %p60, %p61
      %p64 = scmp.ne.s32.totalorder %s49, %s63
      %p65 = scmp.eq.s32.totalorder %s18, 0
      %p66 = por %p64, %p65
      %s68 = sadd.s32 %s67, 1
      %p71 = scmp.eq.s32.totalorder %s12, 1
      %p72 = scmp.ne.s32.totalorder %s67, %s69
      %p73 = scmp.eq.s32.totalorder %s12, 0
      %p74 = por %p72, %p73
      %p75 = scmp.ne.s32.totalorder %s67, %s69
      %p76 = scmp.eq.s32.totalorder %s17, 1
      %p77 = por %p75, %p76
      %p78 = scmp.ne.s32.totalorder %s69, %s70
      %p79 = scmp.eq.s32.totalorder %s17, 0
      %p80 = por %p78, %p79
      %p81 = scmp.ne.s32.totalorder %s69, %s70
      %p82 = scmp.eq.s32.totalorder %s18, 1
      %p83 = por %p81, %p82
      %p85 = scmp.ne.s32.totalorder %s70, %s84
      %p86 = scmp.eq.s32.totalorder %s18, 0
      %p87 = por %p85, %p86
      %s88 = ssub.s32 %s12, %s19
      %p89 = scmp.eq.s32.totalorder %s88, 0
      %s91 = sadd.s32 %s90, 1
      %s92 = scalar_select %p89, %s90, %s91
      %p95 = pneg %p89
      %p96 = scmp.eq.s32.totalorder %s12, 1
      %p97 = por %p95, %p96
      %p98 = scmp.ne.s32.totalorder %s90, %s93
      %p99 = scmp.eq.s32.totalorder %s12, 0
      %p100 = por %p98, %p99
      %p101 = scmp.ne.s32.totalorder %s90, %s93
      %p102 = scmp.eq.s32.totalorder %s17, 1
      %p103 = por %p101, %p102
      %p104 = scmp.ne.s32.totalorder %s93, %s94
      %p105 = scmp.eq.s32.totalorder %s17, 0
      %p106 = por %p104, %p105
      %p107 = scmp.ne.s32.totalorder %s93, %s94
      %p108 = scmp.eq.s32.totalorder %s18, 1
      %p109 = por %p107, %p108
      %p111 = scmp.ne.s32.totalorder %s94, %s110
      %p112 = scmp.eq.s32.totalorder %s18, 0
      %p113 = por %p111, %p112
      %p114 = scmp.le.s32.totalorder 1, %s12
      %p115 = scmp.lt.s32.totalorder %s12, 3
      %p116 = pnand %p114, %p115
      %p117 = pneg %p116
      // Predicated region
      $region9: #{tpu_custom_call.1} parent=5 // pred_check
        _
      $region10: #{tpu_custom_call.1} parent=5 // pred_check_branch
        %119 = sbr.rel (%p116) target = $region12
      $region11: #{tpu_custom_call.1} parent=5 // pred_region
        %s120 = ssub.s32 %s12, 1
        // Predicated region
        $region13: #{tpu_custom_call.1} parent=11 // pred_check
          %p121 = pneg %p59
        $region14: #{tpu_custom_call.1} parent=11 // pred_check_branch
          %123 = sbr.rel (%p121) target = $region16
        $region15: #{tpu_custom_call.1} parent=11 // pred_region
          _
        $region16: #{tpu_custom_call.1} parent=11 // pred_fallthru
          _
        // Predicated region
        $region17: #{tpu_custom_call.1} parent=11 // pred_check
          %p124 = pneg %p80
        $region18: #{tpu_custom_call.1} parent=11 // pred_check_branch
          %126 = sbr.rel (%p124) target = $region20
        $region19: #{tpu_custom_call.1} parent=11 // pred_region
          _
        $region20: #{tpu_custom_call.1} parent=11 // pred_fallthru
          _
      $region12: #{tpu_custom_call.1} parent=5 // pred_fallthru
        _
      %p127 = scmp.lt.s32.totalorder %s12, 2
      // Predicated region
      $region21: #{tpu_custom_call.1} parent=5 // pred_check
        %p128 = pneg %p127
      $region22: #{tpu_custom_call.1} parent=5 // pred_check_branch
        %130 = sbr.rel (%p128) target = $region24
      $region23: #{tpu_custom_call.1} parent=5 // pred_region
        // Predicated region
        $region25: #{tpu_custom_call.1} parent=23 // pred_check
          %p131 = pneg %p32
        $region26: #{tpu_custom_call.1} parent=23 // pred_check_branch
          %133 = sbr.rel (%p131) target = $region28
        $region27: #{tpu_custom_call.1} parent=23 // pred_region
          %p134 = scmp.lt.s32.totalorder %s12, 1
          %s135 = scalar_select %p134, %s12, 1
          %s136 = smul.addr %s135, 5
          %s137 = smul.addr %s136, 8
          %s138 = scalar_lea.vmem %s0, %s137
        $region28: #{tpu_custom_call.1} parent=23 // pred_fallthru
          _
      $region24: #{tpu_custom_call.1} parent=5 // pred_fallthru
        _
      %p139 = scmp.le.s32.totalorder 1, %s12
      %p140 = scmp.lt.s32.totalorder %s12, 3
      %p141 = pnand %p139, %p140
      %p142 = pneg %p141
      // Predicated region
      $region29: #{tpu_custom_call.1} parent=5 // pred_check
        _
      $region30: #{tpu_custom_call.1} parent=5 // pred_check_branch
        %144 = sbr.rel (%p141) target = $region32
      $region31: #{tpu_custom_call.1} parent=5 // pred_region
        %s145 = ssub.s32 %s12, 1
        %p146 = scmp.lt.s32.totalorder %s17, 1
        %s147 = scalar_select %p146, %s17, 1
        %s148 = smul.addr %s147, 5
        %s149 = smul.addr %s148, 8
        %s150 = scalar_lea.vmem %s0, %s149
        %p151 = pneg %p38
        %p152 = pneg %p35
        %p153 = pneg %p59
        %p154 = pneg %p56
        %p155 = pneg %p80
        %p156 = pneg %p77
        %p157 = pneg %p106
        %p158 = pneg %p103
        %s159 = sand.u32 %s93, 1
        %s160 = scalar_lea.sflag [#allocation3], %s159
        %s161 = sand.u32 %s93, 1
        %s162 = smul.addr %s161, 8
        %s163 = scalar_lea.vmem [#allocation2], %s162
        %p164 = scmp.lt.s32.totalorder %s17, 1
        %s165 = scalar_select %p164, %s17, 1
        %s166 = smul.addr %s165, 5
        %s167 = smul.addr %s166, 8
        %s168 = scalar_lea.vmem %s0, %s167
        %v169 = vld [vmem:[%s1] sm:$0xff]
        %v170 = vld [vmem:[%s168] sm:$0xff]
        %v171 = vld [vmem:[%s168 + $0x8] sm:$0xff]
        %v172 = vld [vmem:[%s168 + $0x10] sm:$0xff]
        %v173 = vld [vmem:[%s168 + $0x18] sm:$0xff]
        %v174 = vld [vmem:[%s168 + $0x20] sm:$0xf]
        %v175 = vld [vmem:[%s2] sm:$0xff]
        %177 = vset.pattern.permute.xlu0 0
        %178 = vperm.xlu0 %177, %v175
        %v179 = vpop.permute.xlu0 %178
        %vm181 = vcmask 293888
        %v183 = vsel %vm181, %v169, 0
        %vm185 = vcmask 1043456
        %v187 = vsel %vm185, %v174, 0
        %189 = vmatprep.subr.mxu0 0.0
        %190 = vmatpush1.msra.mxu0 %v170
        %191 = vmatprep.subr.mxu0 0.0
        %192 = vmatpush1.msra.mxu0 %v171
        %193 = vmatprep.subr.mxu0 0.0
        %194 = vmatpush1.msra.mxu0 %v172
        %195 = vmatprep.subr.mxu0 0.0
        %196 = vmatpush1.msra.mxu0 %v173
        %197 = vmatprep.subr.mxu0 0.0
        %198 = vmatpush1.msra.mxu0 %v187
        %199 = vmatprep.subr.mxu0 0.0
        %200 = vmatpush1.msra.mxu0 0.0
        %201 = vmatprep.subr.mxu0 0.0
        %202 = vmatpush1.msra.mxu0 0.0
        %203 = vmatprep.subr.mxu0 0.0
        %204 = vmatpush1.msra.mxu0 0.0
        %205 = vmatprep.subr.mxu0 0.0
        %206 = vmatpush1.msra.mxu0 0.0
        %207 = vmatprep.subr.mxu0 0.0
        %208 = vmatpush1.msra.mxu0 0.0
        %209 = vmatprep.subr.mxu0 0.0
        %210 = vmatpush1.msra.mxu0 0.0
        %211 = vmatprep.subr.mxu0 0.0
        %212 = vmatpush1.msra.mxu0 0.0
        %213 = vmatprep.subr.mxu0 0.0
        %214 = vmatpush1.msra.mxu0 0.0
        %215 = vmatprep.subr.mxu0 0.0
        %216 = vmatpush1.msra.mxu0 0.0
        %217 = vmatprep.subr.mxu0 0.0
        %218 = vmatpush1.msra.mxu0 0.0
        %219 = vmatprep.subr.mxu0 0.0
        %220 = vmatpush1.msra.mxu0 0.0
        %221 = vmatprep.subr.mxu0 0.0
        %222 = vmatpush1.msra.mxu0 0.0
        %223 = vmatprep.subr.mxu0 0.0
        %224 = vmatpush1.msra.mxu0 0.0
        %225 = vmatprep.subr.mxu0 0.0
        %226 = vmatpush1.msra.mxu0 0.0
        %227 = vmatprep.subr.mxu0 0.0
        %228 = vmatpush1.msra.mxu0 0.0
        %229 = vmatprep.subr.mxu0 0.0
        %230 = vmatpush1.msra.mxu0 0.0
        %231 = vmatprep.subr.mxu0 0.0
        %232 = vmatpush1.msra.mxu0 0.0
        %233 = vmatprep.subr.mxu0 0.0
        %234 = vmatpush1.msra.mxu0 0.0
        %235 = vmatprep.subr.mxu0 0.0
        %236 = vmatpush1.msra.mxu0 0.0
        %237 = vmatprep.subr.mxu0 0.0
        %238 = vmatpush1.msra.mxu0 0.0
        %239 = vmatprep.subr.mxu0 0.0
        %240 = vmatpush1.msra.mxu0 0.0
        %241 = vmatprep.subr.mxu0 0.0
        %242 = vmatpush1.msra.mxu0 0.0
        %243 = vmatprep.subr.mxu0 0.0
        %244 = vmatpush1.msra.mxu0 0.0
        %245 = vmatprep.subr.mxu0 0.0
        %246 = vmatpush1.msra.mxu0 0.0
        %247 = vmatprep.subr.mxu0 0.0
        %248 = vmatpush1.msra.mxu0 0.0
        %249 = vmatprep.subr.mxu0 0.0
        %250 = vmatpush1.msra.mxu0 0.0
        %251 = vmatprep.subr.mxu0 0.0
        %252 = vmatpush1.msra.mxu0 0.0
        %253 = vmatprep.mubr.f32.mxu0 0.0
        %254 = vmatmul.mubr.f32.gmra.mrb[0].mxu0 %v183
        %v255 = vpop.f32.mrb[0].mxu0
        %v256 = vadd.f32 %v179, %v255
        %v257 = vpop.f32.mrb[0].mxu0
        %258 = vdwg.mxu0
        %vm259 = vcmask 523264
        %v260 = vsel %vm259, %v256, 0.0
        %261 = vadd.xlane.f32.xlu0 %v260
        %v262 = vpop.xlane.xlu0 %261
        %v263 = vrcp.pop 64.0
        %v264 = vmul.f32 %v262, %v263
        %v265 = vsub.f32 %v256, %v264
        %v266 = vmul.f32 %v265, %v265
        %v267 = vsel %vm259, %v266, 0.0
        %268 = vadd.xlane.f32.xlu0 %v267
        %v269 = vpop.xlane.xlu0 %268
        %v270 = vmul.f32 %v269, %v263
        %v271 = vadd.f32 %v270, 1e-05
        %v272 = vrsqrt.pop %v271
        %v273 = vmul.f32 %v265, %v272
        %v274 = vmax.f32 %v273, 0.0
        %275 = vst.msk [vmem:[%s163] sm:$0xff] %vm259, %v274
        %s276 = sand.u32 %s93, 1
        %s277 = scalar_lea.sflag [#allocation3], %s276
        %s278 = sand.u32 %s93, 1
        %s279 = smul.addr %s278, 8
        %s280 = scalar_lea.vmem [#allocation2], %s279
        // Predicated region
        $region33: #{tpu_custom_call.1} parent=31 // pred_check
          %p281 = pneg %p103
        $region34: #{tpu_custom_call.1} parent=31 // pred_check_branch
          %283 = sbr.rel (%p281) target = $region36
        $region35: #{tpu_custom_call.1} parent=31 // pred_region
          %s285 = ssub.s32 128, 128
          %286 = vsyncadd %s277, %s285
          %s287 = smul.addr %s17, 128
          %s288 = scalar_lea.hbm %s3, %s287
          %s290 = sshll.u32 %s280, 4
          %s291 = int_to_ptr.vmem [resolvable:$true] %s290
          %293 = dma.vmem_to_hbm [thread:$0]  %s291, 128, %s288, %s277
        $region36: #{tpu_custom_call.1} parent=31 // pred_fallthru
          _
      $region32: #{tpu_custom_call.1} parent=5 // pred_fallthru
        _
      %p294 = scmp.le.s32.totalorder 2, %s12
      // Predicated region
      $region37: #{tpu_custom_call.1} parent=5 // pred_check
        %p295 = pneg %p294
      $region38: #{tpu_custom_call.1} parent=5 // pred_check_branch
        %297 = sbr.rel (%p295) target = $region40
      $region39: #{tpu_custom_call.1} parent=5 // pred_region
        %s298 = ssub.s32 %s12, 2
        // Predicated region
        $region41: #{tpu_custom_call.1} parent=39 // pred_check
          %p299 = pneg %p109
        $region42: #{tpu_custom_call.1} parent=39 // pred_check_branch
          %301 = sbr.rel (%p299) target = $region44
        $region43: #{tpu_custom_call.1} parent=39 // pred_region
          %s302 = sand.u32 %s94, 1
          %s303 = scalar_lea.sflag [#allocation3], %s302
          %s304 = sand.u32 %s94, 1
          %s305 = smul.addr %s304, 8
          %s306 = scalar_lea.vmem [#allocation2], %s305
          %307 = dma.done %s303, 128
        $region44: #{tpu_custom_call.1} parent=39 // pred_fallthru
          _
      $region40: #{tpu_custom_call.1} parent=5 // pred_fallthru
        _
    $region6: #{tpu_custom_call.1} parent=1 // loop_footer
      %s16 = sadd.s32 1, %s12
    $region7: #{tpu_custom_call.1} parent=1 // loop_footer_branch
      %11 = sbr.rel target = $region3
    $region8: #{tpu_custom_call.1} parent=1 // loop_exit
      _
    %308 = vsyncpa [#allocation3], 1
    %s309 = scalar_lea.sflag [#allocation3], 1
    %310 = vsyncpa %s309, 1

</llo_original>
